<compile_context>
chip_gen: v6e
topology: v6e:2x2x1
jax: 0.10.0
libtpu: 0.0.40
codegen_flags: <defaults>
</compile_context>

<pallas_src>
import math
import functools

import jax
import jax.numpy as jnp
from jax.experimental import pallas as pl
from jax.experimental.pallas import tpu as pltpu


# ----------------------------------------------------------------------------
# Buffer construction (deterministic, mirrors the PyTorch __init__)
# ----------------------------------------------------------------------------
def make_positional_encoding(d_model: int, max_len: int = 30) -> jnp.ndarray:
    position = jnp.arange(max_len, dtype=jnp.float32)[:, None]               # (max_len, 1)
    div_term = jnp.exp(
        jnp.arange(0, d_model, 2, dtype=jnp.float32) * (-math.log(10000.0) / d_model)
    )                                                                        # (d_model//2,)
    pe = jnp.zeros((max_len, d_model), dtype=jnp.float32)
    pe = pe.at[:, 0::2].set(jnp.sin(position * div_term))
    pe = pe.at[:, 1::2].set(jnp.cos(position * div_term))
    return pe                                                                # (max_len, d_model)


# ----------------------------------------------------------------------------
# Pallas kernels
# ----------------------------------------------------------------------------
def pe_add_kernel(x_ref, pe_ref, o_ref):
    # Broadcast add. Works for both layouts:
    #   (TS, B, D) + (TS, 1, D)   and   (TS, B*D) + (TS, B*D)
    y = x_ref[...].astype(jnp.float32) + pe_ref[...].astype(jnp.float32)
    o_ref[...] = y.astype(o_ref.dtype)


def pe_add_dropout_kernel(seed_ref, x_ref, pe_ref, o_ref, *, threshold, scale):
    # Per-tile seed: mix the grid position into the hardware PRNG seed so every tile
    # (and every megacore shard) draws an independent dropout mask.
    pltpu.prng_seed(seed_ref[0], pl.program_id(0))
    y = x_ref[...].astype(jnp.float32) + pe_ref[...].astype(jnp.float32)
    bits = pltpu.bitcast(pltpu.prng_random_bits(y.shape), jnp.uint32)
    # Integer-threshold compare: P(keep) = (2^32 - threshold) / 2^32 = 1 - p.
    keep = bits >= jnp.uint32(threshold)
    o_ref[...] = jnp.where(keep, y * jnp.float32(scale), jnp.float32(0.0)).astype(o_ref.dtype)


# ----------------------------------------------------------------------------
# Wrapper
# ----------------------------------------------------------------------------
def _choose_row_tile(S: int, row_bytes: int, target_bytes: int = 2 * 1024 * 1024) -> int:
    """Rows per block: ~2 MiB per x block (fits default scoped VMEM with double buffering)."""
    ts = max(1, target_bytes // max(1, row_bytes))
    if ts >= S:
        return S
    return max(8, (ts // 8) * 8)  # keep sublane-aligned (multiple of 8)


def positional_encoding_forward(x, pe, *, p: float = 0.1, training: bool = False, seed: int = 0):
    """x: (S, B, D); pe: (max_len, D). Returns dropout(x + pe[:S, None, :])."""
    S, B, D = x.shape
    pe_slice = pe[:S].astype(x.dtype)                                        # (S, D)

    # Lane-dense layout selection.
    if D % 128 == 0:
        # Keep 3D blocks; pe stays tiny ((TS,1,D)) and broadcasts over B in-kernel.
        flattened = False
        x2 = x
        pe2 = pe_slice[:, None, :]                                           # (S, 1, D)

        def x_map(i, *_):  # noqa: E306
            return (i, 0, 0)

        def pe_map(i, *_):
            return (i, 0, 0)

        def x_block(ts):
            return (ts, B, D)

        def pe_block(ts):
            return (ts, 1, D)
    else:
        # Flatten trailing (B, D) so the output last dim is as lane-dense as possible.
        flattened = True
        x2 = x.reshape(S, B * D)
        pe2 = jnp.tile(pe_slice, (1, B))                                     # (S, B*D)

        def x_map(i, *_):
            return (i, 0)

        def pe_map(i, *_):
            return (i, 0)

        def x_block(ts):
            return (ts, B * D)

        def pe_block(ts):
            return (ts, B * D)

    itemsize = jnp.dtype(x.dtype).itemsize
    TS = _choose_row_tile(S, B * D * itemsize)
    grid = (pl.cdiv(S, TS),)

    in_specs = [pl.BlockSpec(x_block(TS), x_map), pl.BlockSpec(pe_block(TS), pe_map)]
    out_spec = pl.BlockSpec(x_block(TS), x_map)
    out_shape = jax.ShapeDtypeStruct(x2.shape, x.dtype)

    on_tpu = jax.default_backend() == "tpu"
    cparams = (
        pltpu.CompilerParams(dimension_semantics=("parallel",)) if on_tpu else None
    )

    if (not training) or p <= 0.0:
        out2 = pl.pallas_call(
            pe_add_kernel,
            out_shape=out_shape,
            grid_spec=pl.GridSpec(grid=grid, in_specs=in_specs, out_specs=out_spec),
            compiler_params=cparams,
        )(x2, pe2)
    elif p >= 1.0:
        # nn.Dropout(p=1.0) zeros everything; 1/(1-p) would be inf, so short-circuit.
        return jnp.zeros_like(x)
    else:
        threshold = min(int(round(p * (2 ** 32))), 2 ** 32 - 1)
        scale = 1.0 / (1.0 - p)
        kernel = functools.partial(pe_add_dropout_kernel, threshold=threshold, scale=scale)
        seed_arr = jnp.asarray([seed], dtype=jnp.int32)
        out2 = pl.pallas_call(
            kernel,
            out_shape=out_shape,
            grid_spec=pltpu.PrefetchScalarGridSpec(
                num_scalar_prefetch=1,
                grid=grid,
                in_specs=in_specs,
                out_specs=out_spec,
            ),
            compiler_params=cparams,
        )(seed_arr, x2, pe2)

    return out2.reshape(S, B, D) if flattened else out2


# ----------------------------------------------------------------------------
# Demo / self-check
# ----------------------------------------------------------------------------
if __name__ == "__main__":
    key = jax.random.PRNGKey(0)

    # Case 1: module-scale shapes (S=8, B=2, d_model=32, max_len=30) — flattened lane path.
    d_model, max_len, S, B = 32, 30, 8, 2
    x = jax.random.normal(key, (S, B, d_model), dtype=jnp.float32)
    pe = make_positional_encoding(d_model, max_len)

    out_eval = jax.block_until_ready(positional_encoding_forward(x, pe, p=0.1, training=False))
    ref = x + pe[:S][:, None, :]
    assert out_eval.shape == (S, B, d_model)
    assert jnp.allclose(out_eval, ref, atol=1e-6, rtol=1e-6)

    # Case 2: lane-aligned d_model=128 exercises the (TS,B,D)+(TS,1,D) broadcast path.
    d_big = 128
    x_big = jax.random.normal(jax.random.PRNGKey(1), (S, B, d_big), dtype=jnp.float32)
    pe_big = make_positional_encoding(d_big, max_len)
    out_big = jax.block_until_ready(positional_encoding_forward(x_big, pe_big, training=False))
    ref_big = x_big + pe_big[:S][:, None, :]
    assert jnp.allclose(out_big, ref_big, atol=1e-6, rtol=1e-6)

    # Training path uses the TPU hardware PRNG (pltpu.prng_seed / prng_random_bits),
    # which has no CPU/interpret lowering — only exercise it on a real TPU backend.
    # TODO(synk): PyTorch's dropout RNG stream is not bit-reproducible; this implements
    # equivalent inverted-dropout semantics with the TPU hardware PRNG.
    if jax.default_backend() == "tpu":
        p = 0.1
        out_tr = jax.block_until_ready(
            positional_encoding_forward(x, pe, p=p, training=True, seed=0)
        )
        assert out_tr.shape == (S, B, d_model)
        scaled_ref = ref / (1.0 - p)
        kept = out_tr != 0
        # Surviving elements equal (x + pe) / (1 - p); dropped elements are exactly 0.
        assert jnp.allclose(jnp.where(kept, out_tr, scaled_ref), scaled_ref,
                            atol=1e-5, rtol=1e-5)

    print("KERNEL_OK")
</pallas_src>

<mosaic_0001>
module attributes {stable_mosaic.version = 11 : i64} {
  func.func @pe_add_kernel(%arg0: i32, %arg1: memref<8x64xf32, #tpu.memory_space<vmem>>, %arg2: memref<8x64xf32, #tpu.memory_space<vmem>>, %arg3: memref<8x64xf32, #tpu.memory_space<vmem>>) attributes {dimension_semantics = [#tpu.dimension_semantics<arbitrary>], iteration_bounds = array<i64: 1>, scalar_prefetch = 0 : i64, scratch_operands = 0 : i64, tpu.core_type = #tpu.core_type<tc>, window_params = [{transform_indices = @transform_0, window_bounds = array<i64: 8, 64>}, {transform_indices = @transform_1, window_bounds = array<i64: 8, 64>}, {transform_indices = @transform_2, window_bounds = array<i64: 8, 64>}]} {
    %c0 = arith.constant 0 : index
    %c0_0 = arith.constant 0 : index
    %0 = vector.load %arg1[%c0, %c0_0] : memref<8x64xf32, #tpu.memory_space<vmem>>, vector<8x64xf32>
    %c0_1 = arith.constant 0 : index
    %c0_2 = arith.constant 0 : index
    %1 = vector.load %arg2[%c0_1, %c0_2] : memref<8x64xf32, #tpu.memory_space<vmem>>, vector<8x64xf32>
    %2 = arith.addf %0, %1 : vector<8x64xf32>
    %c0_3 = arith.constant 0 : index
    %c0_4 = arith.constant 0 : index
    %3 = vector.load %arg3[%c0_3, %c0_4] : memref<8x64xf32, #tpu.memory_space<vmem>>, vector<8x64xf32>
    tpu.vector_store %arg3[%c0_3, %c0_4], %2 {strides = array<i32>} : memref<8x64xf32, #tpu.memory_space<vmem>>, vector<8x64xf32>,
    return
  }
  func.func @transform_0(%arg0: i32) -> (i32, i32) {
    %c0_i32 = arith.constant 0 : i32
    %c0_i32_0 = arith.constant 0 : i32
    return %arg0, %c0_i32 : i32, i32
  }
  func.func @transform_1(%arg0: i32) -> (i32, i32) {
    %c0_i32 = arith.constant 0 : i32
    %c0_i32_0 = arith.constant 0 : i32
    return %arg0, %c0_i32 : i32, i32
  }
  func.func @transform_2(%arg0: i32) -> (i32, i32) {
    %c0_i32 = arith.constant 0 : i32
    %c0_i32_0 = arith.constant 0 : i32
    return %arg0, %c0_i32 : i32, i32
  }
}

</mosaic_0001>

<llo_original>
// kernel: tpu_custom_call.1
$region0: #{tpu_custom_call.1}
  #allocation0 [shape = 'u32[]', space=smem, size = 0x4, offset = 0x4, fixed_abs, tag = 'smem constant byte address 0x4 - core index']
  #allocation1 [shape = 'u32[144,128]{1,0:T(1,128)}', space=vmem, size = 0x12000, scoped, tag = 'internal scratch']
  %s0 = inlined_call_operand.hbm [shape: f32[8,64], index: 0, kind: input, shape index: {}]
  %s1 = inlined_call_operand.hbm [shape: f32[8,64], index: 1, kind: input, shape index: {}]
  %s2 = inlined_call_operand.hbm [shape: f32[8,64], index: 2, kind: output, shape index: {}]
  %s3 = sld [smem:[#allocation0]]
  $region26: #{tpu_custom_call.1} parent=0
    _
  %s5 = ssub.s32 1, %s3
  %s6 = scalar_select 0, %s5, %s3
  $region1: #{tpu_custom_call.1} parent=0
    #allocation2 [shape = 'u8[4096]{0}', space=vmem, size = 0x1000, scoped, tag = 'input window, operand 0, single buffered']
    #allocation3 [shape = 's32[1]{0}', space=sflag, size = 0x4, scoped, tag = 'scoped memory for tpu_custom_call.1']
    #allocation4 [shape = 's32[1]{0}', space=sflag, size = 0x4, scoped, tag = 'scoped memory for tpu_custom_call.1']
    #allocation5 [shape = 'u8[4096]{0}', space=vmem, size = 0x1000, scoped, tag = 'input window, operand 1, single buffered']
    #allocation6 [shape = 's32[1]{0}', space=sflag, size = 0x4, scoped, tag = 'scoped memory for tpu_custom_call.1']
    #allocation7 [shape = 'u8[4096]{0}', space=vmem, size = 0x1000, scoped, tag = 'output window, operand 0, single buffered']
    %7 = vsyncpa [#allocation3], 0
    %8 = vsyncpa [#allocation6], 0
    %9 = vsyncpa [#allocation4], 0
    // Predicated region
    $region2: #{tpu_custom_call.1} parent=1 // pred_check
      _
    $region3: #{tpu_custom_call.1} parent=1 // pred_check_branch
      %11 = sbr.rel (0) target = $region5
    $region4: #{tpu_custom_call.1} parent=1 // pred_region
      %s13 = ssub.s32 128, 128
      %14 = vsyncadd [#allocation3], %s13
      %s16 = sshll.u32 [#allocation2], 4
      %s17 = int_to_ptr.vmem [resolvable:$true] %s16
      %19 = dma.hbm_to_vmem [thread:$0]  %s0, 128, %s17, [#allocation3]
    $region5: #{tpu_custom_call.1} parent=1 // pred_fallthru
      _
    // Predicated region
    $region6: #{tpu_custom_call.1} parent=1 // pred_check
      _
    $region7: #{tpu_custom_call.1} parent=1 // pred_check_branch
      %21 = sbr.rel (0) target = $region9
    $region8: #{tpu_custom_call.1} parent=1 // pred_region
      %s23 = ssub.s32 128, 128
      %24 = vsyncadd [#allocation6], %s23
      %s26 = sshll.u32 [#allocation5], 4
      %s27 = int_to_ptr.vmem [resolvable:$true] %s26
      %29 = dma.hbm_to_vmem [thread:$0]  %s1, 128, %s27, [#allocation6]
    $region9: #{tpu_custom_call.1} parent=1 // pred_fallthru
      _
    // Predicated region
    $region10: #{tpu_custom_call.1} parent=1 // pred_check
      _
    $region11: #{tpu_custom_call.1} parent=1 // pred_check_branch
      %31 = sbr.rel (0) target = $region13
    $region12: #{tpu_custom_call.1} parent=1 // pred_region
      %32 = dma.done [#allocation3], 128
    $region13: #{tpu_custom_call.1} parent=1 // pred_fallthru
      _
    // Predicated region
    $region14: #{tpu_custom_call.1} parent=1 // pred_check
      _
    $region15: #{tpu_custom_call.1} parent=1 // pred_check_branch
      %34 = sbr.rel (0) target = $region17
    $region16: #{tpu_custom_call.1} parent=1 // pred_region
      %35 = dma.done [#allocation6], 128
    $region17: #{tpu_custom_call.1} parent=1 // pred_fallthru
      _
    %v36 = vld [vmem:[#allocation2] sm:$0xff]
    %v37 = vld [vmem:[#allocation5] sm:$0xff]
    %v38 = vadd.f32 %v36, %v37
    %vm39 = vcmask 523264
    %40 = vst.msk [vmem:[#allocation7] sm:$0xff] %vm39, %v38
    // Predicated region
    $region18: #{tpu_custom_call.1} parent=1 // pred_check
      _
    $region19: #{tpu_custom_call.1} parent=1 // pred_check_branch
      %42 = sbr.rel (0) target = $region21
    $region20: #{tpu_custom_call.1} parent=1 // pred_region
      %s44 = ssub.s32 128, 128
      %45 = vsyncadd [#allocation4], %s44
      %s47 = sshll.u32 [#allocation7], 4
      %s48 = int_to_ptr.vmem [resolvable:$true] %s47
      %50 = dma.vmem_to_hbm [thread:$0]  %s48, 128, %s2, [#allocation4]
    $region21: #{tpu_custom_call.1} parent=1 // pred_fallthru
      _
    // Predicated region
    $region22: #{tpu_custom_call.1} parent=1 // pred_check
      _
    $region23: #{tpu_custom_call.1} parent=1 // pred_check_branch
      %52 = sbr.rel (0) target = $region25
    $region24: #{tpu_custom_call.1} parent=1 // pred_region
      %53 = dma.done [#allocation4], 128
    $region25: #{tpu_custom_call.1} parent=1 // pred_fallthru
      _
    %54 = vsyncpa [#allocation3], 1
    %55 = vsyncpa [#allocation6], 1
    %56 = vsyncpa [#allocation4], 1

</llo_original>
